<compile_context>
chip_gen: v7x
topology: tpu7x:2x2x1
jax: 0.10.0
libtpu: 0.0.40
codegen_flags: <defaults>
</compile_context>

<pallas_src>
import math
from functools import partial

import jax
import jax.numpy as jnp
from jax.experimental import pallas as pl
from jax.experimental.pallas import tpu as pltpu

LANE = 128         # TPU lane width: all feature dims padded to this
SUBLANE = 8        # minimum useful sublane rows
BATCH_TILE = 1024  # rows per grid step once the batch is large enough to tile


# ---------------------------------------------------------------------------
# Kernel
# ---------------------------------------------------------------------------
def _mlp_kernel(x_ref, w_ref, o_ref):
    """Fused 3-layer MLP.

    x_ref: (TB, 128) bf16 activations; column 127 holds the constant 1.0
           (bias column), real features in columns [0, in_size).
    w_ref: (3, 128, 128) bf16 packed [W; b] slabs. For each layer, rows
           [0, fan_in) hold W (in, out layout), row 127 holds the bias, and
           for layers 1/2 w[127, 127] == 1 so the ones-column self-propagates
           through the matmul and survives the ReLU.
    o_ref: (TB, 128) bf16 lane-dense output slab.
    """
    x = x_ref[...]
    # Layer 1 -- bias rides the MXU via the ones column / bias row.
    h = jnp.dot(x, w_ref[0], preferred_element_type=jnp.float32)
    h = jnp.maximum(h, 0.0)                       # ReLU in f32 (v5e-safe)
    # Layer 2
    h = jnp.dot(h.astype(x.dtype), w_ref[1], preferred_element_type=jnp.float32)
    h = jnp.maximum(h, 0.0)
    # Layer 3 (no activation)
    out = jnp.dot(h.astype(x.dtype), w_ref[2], preferred_element_type=jnp.float32)
    o_ref[...] = out.astype(o_ref.dtype)


# ---------------------------------------------------------------------------
# Parameter init / packing
# ---------------------------------------------------------------------------
def init_linear_qnet_params(key, input_size, hidden_size, second_hidden_size,
                            output_size):
    """PyTorch nn.Linear default init: U(-1/sqrt(fan_in), 1/sqrt(fan_in)).
    Weights stored (in_features, out_features); biases (1, out_features)."""
    ks = jax.random.split(key, 6)

    def _layer(kw, kb, fan_in, fan_out):
        bound = 1.0 / math.sqrt(fan_in)
        w = jax.random.uniform(kw, (fan_in, fan_out), jnp.float32, -bound, bound)
        b = jax.random.uniform(kb, (1, fan_out), jnp.float32, -bound, bound)
        return w, b

    w1, b1 = _layer(ks[0], ks[1], input_size, hidden_size)
    w2, b2 = _layer(ks[2], ks[3], hidden_size, second_hidden_size)
    w3, b3 = _layer(ks[4], ks[5], second_hidden_size, output_size)
    return {"w1": w1, "b1": b1, "w2": w2, "b2": b2, "w3": w3, "b3": b3}


def pack_linear_qnet_params(params, dtype=jnp.bfloat16):
    """Pack the 3 (W, b) pairs into one (3, LANE, LANE) slab for the kernel.

    Bias goes into row LANE-1; layers 1 and 2 also get w[LANE-1, LANE-1] = 1
    so the ones-column of the activations propagates through ReLU.
    Requires fan_in <= LANE-1 and (for layers 1/2) fan_out <= LANE-1.
    """
    def _slab(w, b, propagate_ones):
        fi, fo = w.shape
        assert fi <= LANE - 1, f"fan_in {fi} too large for packed layout"
        assert fo <= (LANE - 1 if propagate_ones else LANE), \
            f"fan_out {fo} too large for packed layout"
        s = jnp.zeros((LANE, LANE), jnp.float32)
        s = s.at[:fi, :fo].set(w)
        s = s.at[LANE - 1, :fo].set(b.reshape(-1))
        if propagate_ones:
            s = s.at[LANE - 1, LANE - 1].set(1.0)
        return s

    packed = jnp.stack([
        _slab(params["w1"], params["b1"], True),
        _slab(params["w2"], params["b2"], True),
        _slab(params["w3"], params["b3"], False),
    ])
    return packed.astype(dtype)


# ---------------------------------------------------------------------------
# Forward wrapper (single jit: pad -> pallas_call -> slice all fuse)
# ---------------------------------------------------------------------------
@partial(jax.jit, static_argnames=("input_size", "output_size", "batch_tile"))
def linear_qnet_forward(x, packed_w, *, input_size, output_size,
                        batch_tile=BATCH_TILE):
    """Forward pass of Linear_QNet via the fused Pallas kernel.

    x:        (batch, input_size) float32
    packed_w: (3, LANE, LANE) bf16 from pack_linear_qnet_params
    Returns   (batch, output_size) float32
    """
    batch = x.shape[0]
    compute_dtype = packed_w.dtype

    # Padded row count: >= 8, multiple of 8 sublanes; if we end up tiling the
    # batch axis, pad directly to a multiple of the tile (one allocation, no
    # second jnp.pad materialization).
    batch_pad = max(SUBLANE, -(-batch // SUBLANE) * SUBLANE)
    tiled = batch_pad > batch_tile
    total_rows = (-(-batch_pad // batch_tile) * batch_tile) if tiled else batch_pad

    # Layout plumbing (fused under jit): pad features to 128 lanes, write the
    # bias ones-column at lane 127, cast to the bf16 MXU dtype.
    xp = jnp.zeros((total_rows, LANE), jnp.float32)
    xp = xp.at[:batch, :input_size].set(x)
    xp = xp.at[:, LANE - 1].set(1.0)
    xp = xp.astype(compute_dtype)

    if not tiled:
        # Small batch: single grid-less fused invocation, everything in VMEM.
        vmem = pl.BlockSpec(memory_space=pltpu.MemorySpace.VMEM)
        out = pl.pallas_call(
            _mlp_kernel,
            out_shape=jax.ShapeDtypeStruct((total_rows, LANE), compute_dtype),
            in_specs=[vmem, vmem],
            out_specs=vmem,
        )(xp, packed_w)
    else:
        # Large batch: tile the batch axis; weights stay resident; the parallel
        # axis lets megacore parts shard grid steps across TensorCores.
        tb = batch_tile
        out = pl.pallas_call(
            _mlp_kernel,
            out_shape=jax.ShapeDtypeStruct((total_rows, LANE), compute_dtype),
            grid_spec=pltpu.PrefetchScalarGridSpec(
                num_scalar_prefetch=0,
                grid=(total_rows // tb,),
                in_specs=[
                    pl.BlockSpec((tb, LANE), lambda i: (i, 0)),
                    pl.BlockSpec((3, LANE, LANE), lambda i: (0, 0, 0)),
                ],
                out_specs=pl.BlockSpec((tb, LANE), lambda i: (i, 0)),
            ),
            compiler_params=pltpu.CompilerParams(
                dimension_semantics=("parallel",)),
        )(xp, packed_w)

    # Only the (batch, output_size) corner is meaningful; upcast just that.
    return out[:batch, :output_size].astype(jnp.float32)


# ---------------------------------------------------------------------------
# Reference (pure JAX, f32) and self-test
# ---------------------------------------------------------------------------
def _reference_forward(x, p):
    h = jnp.maximum(x @ p["w1"] + p["b1"], 0.0)
    h = jnp.maximum(h @ p["w2"] + p["b2"], 0.0)
    return h @ p["w3"] + p["b3"]


if __name__ == "__main__":
    # Shapes consistent with a small Q-network.
    input_size, hidden, second_hidden, output_size = 11, 32, 32, 4

    key = jax.random.PRNGKey(0)
    key_x, key_x2, key_p = jax.random.split(key, 3)
    params = init_linear_qnet_params(key_p, input_size, hidden, second_hidden,
                                     output_size)
    packed = pack_linear_qnet_params(params)

    # --- small batch (grid-less fused path, the RL action-selection case) ---
    x_small = jax.random.normal(key_x, (2, input_size), jnp.float32)
    out_small = linear_qnet_forward(x_small, packed, input_size=input_size,
                                    output_size=output_size)
    out_small = jax.block_until_ready(out_small)
    ref_small = _reference_forward(x_small, params)
    assert out_small.shape == (2, output_size)
    # bf16 matmul operands + bf16 output slab (f32 accumulate) -> loose tol.
    assert jnp.allclose(out_small, ref_small, atol=3e-2, rtol=3e-2), (
        jnp.max(jnp.abs(out_small - ref_small)))

    # --- batch-tiled 'parallel' grid path (force tiling with a small tile so
    #     the test stays small; production default is BATCH_TILE=1024) ---
    x_big = jax.random.normal(key_x2, (300, input_size), jnp.float32)
    out_big = linear_qnet_forward(x_big, packed, input_size=input_size,
                                  output_size=output_size, batch_tile=128)
    out_big = jax.block_until_ready(out_big)
    ref_big = _reference_forward(x_big, params)
    assert out_big.shape == (300, output_size)
    assert jnp.allclose(out_big, ref_big, atol=3e-2, rtol=3e-2), (
        jnp.max(jnp.abs(out_big - ref_big)))

    # TODO(synk): Linear_QNet.save() (torch.save / JSON file I/O) has no Pallas
    # equivalent and is intentionally not implemented.
    print("KERNEL_OK")
</pallas_src>

<mosaic_0001>
module attributes {stable_mosaic.version = 11 : i64} {
  func.func @_mlp_kernel(%arg0: memref<8x128xbf16, #tpu.memory_space<vmem>>, %arg1: memref<3x128x128xbf16, #tpu.memory_space<vmem>>, %arg2: memref<8x128xbf16, #tpu.memory_space<vmem>>) attributes {dimension_semantics = [], scalar_prefetch = 0 : i64, scratch_operands = 0 : i64, tpu.core_type = #tpu.core_type<tc>} {
    %c0 = arith.constant 0 : index
    %c0_0 = arith.constant 0 : index
    %0 = vector.load %arg0[%c0, %c0_0] : memref<8x128xbf16, #tpu.memory_space<vmem>>, vector<8x128xbf16>
    %c0_1 = arith.constant 0 : index
    %c0_2 = arith.constant 0 : index
    %c0_3 = arith.constant 0 : index
    %1 = vector.load %arg1[%c0_1, %c0_2, %c0_3] : memref<3x128x128xbf16, #tpu.memory_space<vmem>>, vector<1x128x128xbf16>
    %2 = vector.shape_cast %1 : vector<1x128x128xbf16> to vector<128x128xbf16>
    %cst = arith.constant dense<0.000000e+00> : vector<8x128xf32>
    %3 = tpu.matmul %0, %2, %cst {dimension_numbers = #tpu.dot_dimension_numbers<[1], [0], [0], [1], [0, 0, 1, 1], [], []>} : vector<8x128xbf16>, vector<128x128xbf16>, vector<8x128xf32> -> vector<8x128xf32>
    %cst_4 = arith.constant 0.000000e+00 : f32
    %4 = vector.broadcast %cst_4 : f32 to vector<8x128xf32>
    %5 = arith.maximumf %3, %4 : vector<8x128xf32>
    %6 = arith.truncf %5 : vector<8x128xf32> to vector<8x128xbf16>
    %c1 = arith.constant 1 : index
    %c0_5 = arith.constant 0 : index
    %c0_6 = arith.constant 0 : index
    %7 = vector.load %arg1[%c1, %c0_5, %c0_6] : memref<3x128x128xbf16, #tpu.memory_space<vmem>>, vector<1x128x128xbf16>
    %8 = vector.shape_cast %7 : vector<1x128x128xbf16> to vector<128x128xbf16>
    %cst_7 = arith.constant dense<0.000000e+00> : vector<8x128xf32>
    %9 = tpu.matmul %6, %8, %cst_7 {dimension_numbers = #tpu.dot_dimension_numbers<[1], [0], [0], [1], [0, 0, 1, 1], [], []>} : vector<8x128xbf16>, vector<128x128xbf16>, vector<8x128xf32> -> vector<8x128xf32>
    %cst_8 = arith.constant 0.000000e+00 : f32
    %10 = vector.broadcast %cst_8 : f32 to vector<8x128xf32>
    %11 = arith.maximumf %9, %10 : vector<8x128xf32>
    %12 = arith.truncf %11 : vector<8x128xf32> to vector<8x128xbf16>
    %c2 = arith.constant 2 : index
    %c0_9 = arith.constant 0 : index
    %c0_10 = arith.constant 0 : index
    %13 = vector.load %arg1[%c2, %c0_9, %c0_10] : memref<3x128x128xbf16, #tpu.memory_space<vmem>>, vector<1x128x128xbf16>
    %14 = vector.shape_cast %13 : vector<1x128x128xbf16> to vector<128x128xbf16>
    %cst_11 = arith.constant dense<0.000000e+00> : vector<8x128xf32>
    %15 = tpu.matmul %12, %14, %cst_11 {dimension_numbers = #tpu.dot_dimension_numbers<[1], [0], [0], [1], [0, 0, 1, 1], [], []>} : vector<8x128xbf16>, vector<128x128xbf16>, vector<8x128xf32> -> vector<8x128xf32>
    %16 = arith.truncf %15 : vector<8x128xf32> to vector<8x128xbf16>
    %c0_12 = arith.constant 0 : index
    %c0_13 = arith.constant 0 : index
    %17 = vector.load %arg2[%c0_12, %c0_13] : memref<8x128xbf16, #tpu.memory_space<vmem>>, vector<8x128xbf16>
    tpu.vector_store %arg2[%c0_12, %c0_13], %16 {strides = array<i32>} : memref<8x128xbf16, #tpu.memory_space<vmem>>, vector<8x128xbf16>,
    return
  }
}

</mosaic_0001>

<llo_original>
// kernel: linear_qnet_forward.1
$region0: #{linear_qnet_forward.1}
  #allocation0 [shape = 'u32[]', space=smem, size = 0x4, offset = 0x4, fixed_abs, tag = 'smem constant byte address 0x4 - core index']
  #allocation1 [shape = 'u32[144,128]{1,0:T(1,128)}', space=vmem, size = 0x12000, scoped, tag = 'internal scratch']
  %s0 = inlined_call_operand.vmem [shape: bf16[8,128], index: 0, kind: input, shape index: {}]
  %s1 = inlined_call_operand.hbm [shape: bf16[3,128,128], index: 1, kind: input, shape index: {}]
  %s2 = inlined_call_operand.vmem [shape: bf16[8,128], index: 2, kind: output, shape index: {}]
  %s3 = sld [smem:[#allocation0]]
  $region22: #{linear_qnet_forward.1} parent=0
    _
  %s5 = ssub.s32 1, %s3
  %s6 = scalar_select 0, %s5, %s3
  $region1: #{linear_qnet_forward.1} parent=0
    #allocation2 [shape = 'u8[98304]{0}', space=vmem, size = 0x18000, scoped, tag = 'input window, operand 1, single buffered']
    #allocation3 [shape = 's32[1]{0}', space=sflag, size = 0x4, scoped, tag = 'scoped memory for linear_qnet_forward.1']
    %7 = vsyncpa [#allocation3], 0
    // Predicated region
    $region2: #{linear_qnet_forward.1} parent=1 // pred_check
      _
    $region3: #{linear_qnet_forward.1} parent=1 // pred_check_branch
      %9 = sbr.rel (0) target = $region5
    $region4: #{linear_qnet_forward.1} parent=1 // pred_region
      _
    $region5: #{linear_qnet_forward.1} parent=1 // pred_fallthru
      _
    // Predicated region
    $region6: #{linear_qnet_forward.1} parent=1 // pred_check
      _
    $region7: #{linear_qnet_forward.1} parent=1 // pred_check_branch
      %11 = sbr.rel (0) target = $region9
    $region8: #{linear_qnet_forward.1} parent=1 // pred_region
      %s13 = ssub.s32 3072, 3072
      %14 = vsyncadd [#allocation3], %s13
      %s15 = sshll.u32 [#allocation2], 4
      %s16 = int_to_ptr.vmem [resolvable:$true] %s15
      %21 = dma.hbm_to_vmem [thread:$0]  %s1, 3072, %s16, [#allocation3], 64, 64, 4
    $region9: #{linear_qnet_forward.1} parent=1 // pred_fallthru
      _
    // Predicated region
    $region10: #{linear_qnet_forward.1} parent=1 // pred_check
      _
    $region11: #{linear_qnet_forward.1} parent=1 // pred_check_branch
      %23 = sbr.rel (0) target = $region13
    $region12: #{linear_qnet_forward.1} parent=1 // pred_region
      %24 = dma.done [#allocation3], 3072
    $region13: #{linear_qnet_forward.1} parent=1 // pred_fallthru
      _
    %v26 = vld [vmem:[%s0] sm:$0xf]
    %v27 = vld [vmem:[#allocation2] sm:$0xf]
    %v28 = vld [vmem:[#allocation2 + $0x4] sm:$0xf]
    %v29 = vld [vmem:[#allocation2 + $0x8] sm:$0xf]
    %v30 = vld [vmem:[#allocation2 + $0xc] sm:$0xf]
    %v31 = vld [vmem:[#allocation2 + $0x10] sm:$0xf]
    %v32 = vld [vmem:[#allocation2 + $0x14] sm:$0xf]
    %v33 = vld [vmem:[#allocation2 + $0x18] sm:$0xf]
    %v34 = vld [vmem:[#allocation2 + $0x1c] sm:$0xf]
    %v35 = vld [vmem:[#allocation2 + $0x20] sm:$0xf]
    %v36 = vld [vmem:[#allocation2 + $0x24] sm:$0xf]
    %v37 = vld [vmem:[#allocation2 + $0x28] sm:$0xf]
    %v38 = vld [vmem:[#allocation2 + $0x2c] sm:$0xf]
    %v39 = vld [vmem:[#allocation2 + $0x30] sm:$0xf]
    %v40 = vld [vmem:[#allocation2 + $0x34] sm:$0xf]
    %v41 = vld [vmem:[#allocation2 + $0x38] sm:$0xf]
    %v42 = vld [vmem:[#allocation2 + $0x3c] sm:$0xf]
    %v59 = vunpack.c.l.b16 %v27
    %v60 = vunpack.c.l.b16 %v28
    %v61 = vunpack.c.l.b16 %v29
    %v62 = vunpack.c.l.b16 %v30
    %v63 = vunpack.c.l.b16 %v31
    %v64 = vunpack.c.l.b16 %v32
    %v65 = vunpack.c.l.b16 %v33
    %v66 = vunpack.c.l.b16 %v34
    %v67 = vunpack.c.l.b16 %v35
    %v68 = vunpack.c.l.b16 %v36
    %v69 = vunpack.c.l.b16 %v37
    %v70 = vunpack.c.l.b16 %v38
    %v71 = vunpack.c.l.b16 %v39
    %v72 = vunpack.c.l.b16 %v40
    %v73 = vunpack.c.l.b16 %v41
    %v74 = vunpack.c.l.b16 %v42
    %v75 = vpack.c.b16 %v60, %v59
    %v76 = vpack.c.b16 %v62, %v61
    %v77 = vpack.c.b16 %v64, %v63
    %v78 = vpack.c.b16 %v66, %v65
    %v79 = vpack.c.b16 %v68, %v67
    %v80 = vpack.c.b16 %v70, %v69
    %v81 = vpack.c.b16 %v72, %v71
    %v82 = vpack.c.b16 %v74, %v73
    %91 = vmatprep.subr.bf16.mxu0 0
    %92 = vmatpush1.bf16.msra.mxu0 %v75
    %93 = vmatprep.subr.bf16.mxu0 0
    %94 = vmatpush1.bf16.msra.mxu0 %v76
    %95 = vmatprep.subr.bf16.mxu0 0
    %96 = vmatpush1.bf16.msra.mxu0 %v77
    %97 = vmatprep.subr.bf16.mxu0 0
    %98 = vmatpush1.bf16.msra.mxu0 %v78
    %99 = vmatprep.subr.bf16.mxu0 0
    %100 = vmatpush1.bf16.msra.mxu0 %v79
    %101 = vmatprep.subr.bf16.mxu0 0
    %102 = vmatpush1.bf16.msra.mxu0 %v80
    %103 = vmatprep.subr.bf16.mxu0 0
    %104 = vmatpush1.bf16.msra.mxu0 %v81
    %105 = vmatprep.subr.bf16.mxu0 0
    %106 = vmatpush1.bf16.msra.mxu0 %v82
    %107 = vmatprep.subr.bf16.mxu0 0
    %108 = vmatpush1.bf16.msra.mxu0 0
    %109 = vmatprep.subr.bf16.mxu0 0
    %110 = vmatpush1.bf16.msra.mxu0 0
    %111 = vmatprep.subr.bf16.mxu0 0
    %112 = vmatpush1.bf16.msra.mxu0 0
    %113 = vmatprep.subr.bf16.mxu0 0
    %114 = vmatpush1.bf16.msra.mxu0 0
    %115 = vmatprep.subr.bf16.mxu0 0
    %116 = vmatpush1.bf16.msra.mxu0 0
    %117 = vmatprep.subr.bf16.mxu0 0
    %118 = vmatpush1.bf16.msra.mxu0 0
    %119 = vmatprep.subr.bf16.mxu0 0
    %120 = vmatpush1.bf16.msra.mxu0 0
    %121 = vmatprep.subr.bf16.mxu0 0
    %122 = vmatpush1.bf16.msra.mxu0 0
    %123 = vmatprep.mubr.bf16.mxu0 0
    %124 = vmatmul.mubr.bf16.gmra.mrb[0].mxu0 %v26
    %v125 = vpop.f32.mrb[0].mxu0
    %v126 = vadd.f32 0.0, %v125
    %v127 = vpop.f32.mrb[0].mxu0
    %v128 = vpop.f32.mrb[0].mxu0
    %v129 = vpop.f32.mrb[0].mxu0
    %130 = vdwg.mxu0
    %v131 = vmax.f32 %v126, 0.0
    %v132 = vpack.c.bf16 %v131, %v131
    %s133 = scalar_lea.vmem [#allocation2], 64
    %v134 = vld [vmem:[%s133] sm:$0xf]
    %v135 = vld [vmem:[%s133 + $0x4] sm:$0xf]
    %v136 = vld [vmem:[%s133 + $0x8] sm:$0xf]
    %v137 = vld [vmem:[%s133 + $0xc] sm:$0xf]
    %v138 = vld [vmem:[%s133 + $0x10] sm:$0xf]
    %v139 = vld [vmem:[%s133 + $0x14] sm:$0xf]
    %v140 = vld [vmem:[%s133 + $0x18] sm:$0xf]
    %v141 = vld [vmem:[%s133 + $0x1c] sm:$0xf]
    %v142 = vld [vmem:[%s133 + $0x20] sm:$0xf]
    %v143 = vld [vmem:[%s133 + $0x24] sm:$0xf]
    %v144 = vld [vmem:[%s133 + $0x28] sm:$0xf]
    %v145 = vld [vmem:[%s133 + $0x2c] sm:$0xf]
    %v146 = vld [vmem:[%s133 + $0x30] sm:$0xf]
    %v147 = vld [vmem:[%s133 + $0x34] sm:$0xf]
    %v148 = vld [vmem:[%s133 + $0x38] sm:$0xf]
    %v149 = vld [vmem:[%s133 + $0x3c] sm:$0xf]
    %v166 = vunpack.c.l.b16 %v134
    %v167 = vunpack.c.l.b16 %v135
    %v168 = vunpack.c.l.b16 %v136
    %v169 = vunpack.c.l.b16 %v137
    %v170 = vunpack.c.l.b16 %v138
    %v171 = vunpack.c.l.b16 %v139
    %v172 = vunpack.c.l.b16 %v140
    %v173 = vunpack.c.l.b16 %v141
    %v174 = vunpack.c.l.b16 %v142
    %v175 = vunpack.c.l.b16 %v143
    %v176 = vunpack.c.l.b16 %v144
    %v177 = vunpack.c.l.b16 %v145
    %v178 = vunpack.c.l.b16 %v146
    %v179 = vunpack.c.l.b16 %v147
    %v180 = vunpack.c.l.b16 %v148
    %v181 = vunpack.c.l.b16 %v149
    %v182 = vpack.c.b16 %v167, %v166
    %v183 = vpack.c.b16 %v169, %v168
    %v184 = vpack.c.b16 %v171, %v170
    %v185 = vpack.c.b16 %v173, %v172
    %v186 = vpack.c.b16 %v175, %v174
    %v187 = vpack.c.b16 %v177, %v176
    %v188 = vpack.c.b16 %v179, %v178
    %v189 = vpack.c.b16 %v181, %v180
    %198 = vmatprep.subr.bf16.mxu0 0
    %199 = vmatpush1.bf16.msra.mxu0 %v182
    %200 = vmatprep.subr.bf16.mxu0 0
    %201 = vmatpush1.bf16.msra.mxu0 %v183
    %202 = vmatprep.subr.bf16.mxu0 0
    %203 = vmatpush1.bf16.msra.mxu0 %v184
    %204 = vmatprep.subr.bf16.mxu0 0
    %205 = vmatpush1.bf16.msra.mxu0 %v185
    %206 = vmatprep.subr.bf16.mxu0 0
    %207 = vmatpush1.bf16.msra.mxu0 %v186
    %208 = vmatprep.subr.bf16.mxu0 0
    %209 = vmatpush1.bf16.msra.mxu0 %v187
    %210 = vmatprep.subr.bf16.mxu0 0
    %211 = vmatpush1.bf16.msra.mxu0 %v188
    %212 = vmatprep.subr.bf16.mxu0 0
    %213 = vmatpush1.bf16.msra.mxu0 %v189
    %214 = vmatprep.subr.bf16.mxu0 0
    %215 = vmatpush1.bf16.msra.mxu0 0
    %216 = vmatprep.subr.bf16.mxu0 0
    %217 = vmatpush1.bf16.msra.mxu0 0
    %218 = vmatprep.subr.bf16.mxu0 0
    %219 = vmatpush1.bf16.msra.mxu0 0
    %220 = vmatprep.subr.bf16.mxu0 0
    %221 = vmatpush1.bf16.msra.mxu0 0
    %222 = vmatprep.subr.bf16.mxu0 0
    %223 = vmatpush1.bf16.msra.mxu0 0
    %224 = vmatprep.subr.bf16.mxu0 0
    %225 = vmatpush1.bf16.msra.mxu0 0
    %226 = vmatprep.subr.bf16.mxu0 0
    %227 = vmatpush1.bf16.msra.mxu0 0
    %228 = vmatprep.subr.bf16.mxu0 0
    %229 = vmatpush1.bf16.msra.mxu0 0
    %230 = vmatprep.mubr.bf16.mxu0 0
    %231 = vmatmul.mubr.bf16.gmra.mrb[0].mxu0 %v132
    %v232 = vpop.f32.mrb[0].mxu0
    %v233 = vadd.f32 0.0, %v232
    %v234 = vpop.f32.mrb[0].mxu0
    %v235 = vpop.f32.mrb[0].mxu0
    %v236 = vpop.f32.mrb[0].mxu0
    %237 = vdwg.mxu0
    %v238 = vmax.f32 %v233, 0.0
    %v239 = vpack.c.bf16 %v238, %v238
    %s240 = scalar_lea.vmem [#allocation2], 128
    %v241 = vld [vmem:[%s240] sm:$0xf]
    %v242 = vld [vmem:[%s240 + $0x4] sm:$0xf]
    %v243 = vld [vmem:[%s240 + $0x8] sm:$0xf]
    %v244 = vld [vmem:[%s240 + $0xc] sm:$0xf]
    %v245 = vld [vmem:[%s240 + $0x10] sm:$0xf]
    %v246 = vld [vmem:[%s240 + $0x14] sm:$0xf]
    %v247 = vld [vmem:[%s240 + $0x18] sm:$0xf]
    %v248 = vld [vmem:[%s240 + $0x1c] sm:$0xf]
    %v249 = vld [vmem:[%s240 + $0x20] sm:$0xf]
    %v250 = vld [vmem:[%s240 + $0x24] sm:$0xf]
    %v251 = vld [vmem:[%s240 + $0x28] sm:$0xf]
    %v252 = vld [vmem:[%s240 + $0x2c] sm:$0xf]
    %v253 = vld [vmem:[%s240 + $0x30] sm:$0xf]
    %v254 = vld [vmem:[%s240 + $0x34] sm:$0xf]
    %v255 = vld [vmem:[%s240 + $0x38] sm:$0xf]
    %v256 = vld [vmem:[%s240 + $0x3c] sm:$0xf]
    %v273 = vunpack.c.l.b16 %v241
    %v274 = vunpack.c.l.b16 %v242
    %v275 = vunpack.c.l.b16 %v243
    %v276 = vunpack.c.l.b16 %v244
    %v277 = vunpack.c.l.b16 %v245
    %v278 = vunpack.c.l.b16 %v246
    %v279 = vunpack.c.l.b16 %v247
    %v280 = vunpack.c.l.b16 %v248
    %v281 = vunpack.c.l.b16 %v249
    %v282 = vunpack.c.l.b16 %v250
    %v283 = vunpack.c.l.b16 %v251
    %v284 = vunpack.c.l.b16 %v252
    %v285 = vunpack.c.l.b16 %v253
    %v286 = vunpack.c.l.b16 %v254
    %v287 = vunpack.c.l.b16 %v255
    %v288 = vunpack.c.l.b16 %v256
    %v289 = vpack.c.b16 %v274, %v273
    %v290 = vpack.c.b16 %v276, %v275
    %v291 = vpack.c.b16 %v278, %v277
    %v292 = vpack.c.b16 %v280, %v279
    %v293 = vpack.c.b16 %v282, %v281
    %v294 = vpack.c.b16 %v284, %v283
    %v295 = vpack.c.b16 %v286, %v285
    %v296 = vpack.c.b16 %v288, %v287
    %305 = vmatprep.subr.bf16.mxu0 0
    %306 = vmatpush1.bf16.msra.mxu0 %v289
    %307 = vmatprep.subr.bf16.mxu0 0
    %308 = vmatpush1.bf16.msra.mxu0 %v290
    %309 = vmatprep.subr.bf16.mxu0 0
    %310 = vmatpush1.bf16.msra.mxu0 %v291
    %311 = vmatprep.subr.bf16.mxu0 0
    %312 = vmatpush1.bf16.msra.mxu0 %v292
    %313 = vmatprep.subr.bf16.mxu0 0
    %314 = vmatpush1.bf16.msra.mxu0 %v293
    %315 = vmatprep.subr.bf16.mxu0 0
    %316 = vmatpush1.bf16.msra.mxu0 %v294
    %317 = vmatprep.subr.bf16.mxu0 0
    %318 = vmatpush1.bf16.msra.mxu0 %v295
    %319 = vmatprep.subr.bf16.mxu0 0
    %320 = vmatpush1.bf16.msra.mxu0 %v296
    %321 = vmatprep.subr.bf16.mxu0 0
    %322 = vmatpush1.bf16.msra.mxu0 0
    %323 = vmatprep.subr.bf16.mxu0 0
    %324 = vmatpush1.bf16.msra.mxu0 0
    %325 = vmatprep.subr.bf16.mxu0 0
    %326 = vmatpush1.bf16.msra.mxu0 0
    %327 = vmatprep.subr.bf16.mxu0 0
    %328 = vmatpush1.bf16.msra.mxu0 0
    %329 = vmatprep.subr.bf16.mxu0 0
    %330 = vmatpush1.bf16.msra.mxu0 0
    %331 = vmatprep.subr.bf16.mxu0 0
    %332 = vmatpush1.bf16.msra.mxu0 0
    %333 = vmatprep.subr.bf16.mxu0 0
    %334 = vmatpush1.bf16.msra.mxu0 0
    %335 = vmatprep.subr.bf16.mxu0 0
    %336 = vmatpush1.bf16.msra.mxu0 0
    %337 = vmatprep.mubr.bf16.mxu0 0
    %338 = vmatmul.mubr.bf16.gmra.mrb[0].mxu0 %v239
    %v339 = vpop.f32.mrb[0].mxu0
    %v340 = vadd.f32 0.0, %v339
    %v341 = vpop.f32.mrb[0].mxu0
    %v342 = vpop.f32.mrb[0].mxu0
    %v343 = vpop.f32.mrb[0].mxu0
    %344 = vdwg.mxu0
    %v345 = vpack.c.bf16 %v340, %v340
    %346 = vst [vmem:[%s2] sm:$0xf] %v345
    // Predicated region
    $region14: #{linear_qnet_forward.1} parent=1 // pred_check
      _
    $region15: #{linear_qnet_forward.1} parent=1 // pred_check_branch
      %348 = sbr.rel (0) target = $region17
    $region16: #{linear_qnet_forward.1} parent=1 // pred_region
      _
    $region17: #{linear_qnet_forward.1} parent=1 // pred_fallthru
      _
    // Predicated region
    $region18: #{linear_qnet_forward.1} parent=1 // pred_check
      _
    $region19: #{linear_qnet_forward.1} parent=1 // pred_check_branch
      %350 = sbr.rel (0) target = $region21
    $region20: #{linear_qnet_forward.1} parent=1 // pred_region
      _
    $region21: #{linear_qnet_forward.1} parent=1 // pred_fallthru
      _
    %351 = vsyncpa [#allocation3], 1

</llo_original>
